<compile_context>
chip_gen: v7x
topology: tpu7x:2x2x1
jax: 0.10.0
libtpu: 0.0.40
codegen_flags: <defaults>
</compile_context>

<pallas_src>
import jax
import jax.numpy as jnp
from jax.experimental import pallas as pl
from jax.experimental.pallas import tpu as pltpu


def _ce_kernel(pred_ref, mask_ref, out_ref):
    """One (TR, 128) slab of pixels: accumulate per-pixel CE into out_ref."""
    i = pl.program_id(1)

    @pl.when(i == 0)
    def _():
        out_ref[...] = jnp.zeros_like(out_ref)

    # Class axis unrolled elementwise -> pure full-density VPU/EUP work,
    # no cross-sublane (XLU) reductions in the hot loop.
    p0 = pred_ref[0].astype(jnp.float32)          # (TR, 128)
    p1 = pred_ref[1].astype(jnp.float32)
    p2 = pred_ref[2].astype(jnp.float32)
    m = mask_ref[...]                             # (TR, 128) int32 labels

    # numerically stable logsumexp over the 3 classes
    mx = jnp.maximum(p0, jnp.maximum(p1, p2))
    lse = mx + jnp.log(jnp.exp(p0 - mx) + jnp.exp(p1 - mx) + jnp.exp(p2 - mx))

    # pick the logit of the target class with elementwise selects
    sel = jnp.where(m == 0, p0, jnp.where(m == 1, p1, p2))

    # elementwise accumulation into the resident output block (no per-step
    # scalar reduce, no serialized read-modify-write on a (1,1) scratch)
    out_ref[...] += (lse - sel)[None]


def loss_2d(prediction, mask):
    """Equivalent of the PyTorch loss_2d.forward(prediction, mask)."""
    # Keep the source dtype for the DMA; upcast to f32 inside the kernel.
    pred_flat = prediction.reshape(3, -1)                  # (3, M)
    labels_flat = mask.reshape(-1).astype(jnp.int32)       # (M,)
    M = pred_flat.shape[1]

    C = 128          # lane width
    NCORES = 2       # leading "parallel" axis: shards reduction on v7x megacore
    TR_MAX = 2048    # rows/step -> up to 256K pixels (~4 MiB) per grid step

    r_raw = pl.cdiv(M, C)                                   # rows of pixels
    rows_per_core = max(8, ((pl.cdiv(r_raw, NCORES) + 7) // 8) * 8)
    TR = min(TR_MAX, rows_per_core)
    steps = pl.cdiv(rows_per_core, TR)
    R = NCORES * steps * TR
    M_pad = R * C
    pad_cols = M_pad - M

    if pad_cols:
        # Pad so padded pixels contribute exactly zero loss:
        #   class-0 logit = 30 (>> others), label = 0  =>  lse == sel == 30.
        pad_pred = jnp.zeros((3, pad_cols), pred_flat.dtype).at[0, :].set(
            jnp.asarray(30.0, pred_flat.dtype))
        pred_flat = jnp.concatenate([pred_flat, pad_pred], axis=1)
        labels_flat = jnp.concatenate(
            [labels_flat, jnp.zeros((pad_cols,), jnp.int32)])

    pred3 = pred_flat.reshape(3, R, C)                      # (3, R, 128)
    labels2 = labels_flat.reshape(R, C)                     # (R, 128)

    partial = pl.pallas_call(
        _ce_kernel,
        out_shape=jax.ShapeDtypeStruct((NCORES, TR, C), jnp.float32),
        grid_spec=pltpu.PrefetchScalarGridSpec(
            num_scalar_prefetch=0,
            grid=(NCORES, steps),
            in_specs=[
                pl.BlockSpec((3, TR, C), lambda c, i: (0, c * steps + i, 0)),
                pl.BlockSpec((TR, C), lambda c, i: (c * steps + i, 0)),
            ],
            out_specs=pl.BlockSpec((1, TR, C), lambda c, i: (c, 0, 0)),
        ),
        compiler_params=pltpu.CompilerParams(
            dimension_semantics=("parallel", "arbitrary")),
    )(pred3, labels2)

    # Final scalar reduction + mean over the true pixel count.
    return jnp.sum(partial) / jnp.float32(M)


def _reference(prediction, mask):
    """Pure-JAX reference identical to torch.nn.CrossEntropyLoss semantics."""
    logits = prediction.reshape(3, -1).T.astype(jnp.float32)   # (M, 3)
    labels = mask.reshape(-1).astype(jnp.int32)                # (M,)
    logz = jax.scipy.special.logsumexp(logits, axis=-1)
    picked = jnp.take_along_axis(logits, labels[:, None], axis=-1)[:, 0]
    return jnp.mean(logz - picked)


if __name__ == "__main__":
    key = jax.random.PRNGKey(0)
    k1, k2 = jax.random.split(key)

    # 3-class prediction map over a 16x16 image, integer mask in {0,1,2}
    prediction = jax.random.normal(k1, (3, 16, 16), dtype=jnp.float32)
    mask = jax.random.randint(k2, (16, 16), 0, 3, dtype=jnp.int32)

    loss = loss_2d(prediction, mask)
    jax.block_until_ready(loss)

    ref = _reference(prediction, mask)
    assert jnp.allclose(loss, ref, atol=1e-5, rtol=1e-5), (loss, ref)

    print("KERNEL_OK")
</pallas_src>

<mosaic_0001>
module attributes {stable_mosaic.version = 11 : i64} {
  func.func @_ce_kernel(%arg0: i32, %arg1: i32, %arg2: memref<3x8x128xf32, #tpu.memory_space<vmem>>, %arg3: memref<8x128xi32, #tpu.memory_space<vmem>>, %arg4: memref<1x8x128xf32, #tpu.memory_space<vmem>>) attributes {dimension_semantics = [#tpu.dimension_semantics<parallel>, #tpu.dimension_semantics<arbitrary>], iteration_bounds = array<i64: 2, 1>, scalar_prefetch = 0 : i64, scratch_operands = 0 : i64, tpu.core_type = #tpu.core_type<tc>, window_params = [{transform_indices = @transform_0, window_bounds = array<i64: 3, 8, 128>}, {transform_indices = @transform_1, window_bounds = array<i64: 8, 128>}, {transform_indices = @transform_2, window_bounds = array<i64: 1, 8, 128>}]} {
    %c0_i32 = arith.constant 0 : i32
    %0 = arith.cmpi eq, %arg1, %c0_i32 : i32
    %1 = arith.extui %0 : i1 to i32
    %c0_i32_0 = arith.constant 0 : i32
    %2 = arith.cmpi ne, %1, %c0_i32_0 : i32
    scf.if %2 {
      %cst = arith.constant 0.000000e+00 : f32
      %33 = vector.broadcast %cst : f32 to vector<1x8x128xf32>
      %c0_16 = arith.constant 0 : index
      %c0_17 = arith.constant 0 : index
      %c0_18 = arith.constant 0 : index
      %34 = vector.load %arg4[%c0_16, %c0_17, %c0_18] : memref<1x8x128xf32, #tpu.memory_space<vmem>>, vector<1x8x128xf32>
      tpu.vector_store %arg4[%c0_16, %c0_17, %c0_18], %33 {strides = array<i32>} : memref<1x8x128xf32, #tpu.memory_space<vmem>>, vector<1x8x128xf32>,
    } else {
    }
    %c0 = arith.constant 0 : index
    %c0_1 = arith.constant 0 : index
    %c0_2 = arith.constant 0 : index
    %3 = vector.load %arg2[%c0, %c0_1, %c0_2] : memref<3x8x128xf32, #tpu.memory_space<vmem>>, vector<1x8x128xf32>
    %4 = vector.shape_cast %3 : vector<1x8x128xf32> to vector<8x128xf32>
    %c1 = arith.constant 1 : index
    %c0_3 = arith.constant 0 : index
    %c0_4 = arith.constant 0 : index
    %5 = vector.load %arg2[%c1, %c0_3, %c0_4] : memref<3x8x128xf32, #tpu.memory_space<vmem>>, vector<1x8x128xf32>
    %6 = vector.shape_cast %5 : vector<1x8x128xf32> to vector<8x128xf32>
    %c2 = arith.constant 2 : index
    %c0_5 = arith.constant 0 : index
    %c0_6 = arith.constant 0 : index
    %7 = vector.load %arg2[%c2, %c0_5, %c0_6] : memref<3x8x128xf32, #tpu.memory_space<vmem>>, vector<1x8x128xf32>
    %8 = vector.shape_cast %7 : vector<1x8x128xf32> to vector<8x128xf32>
    %c0_7 = arith.constant 0 : index
    %c0_8 = arith.constant 0 : index
    %9 = vector.load %arg3[%c0_7, %c0_8] : memref<8x128xi32, #tpu.memory_space<vmem>>, vector<8x128xi32>
    %10 = arith.maximumf %6, %8 : vector<8x128xf32>
    %11 = arith.maximumf %4, %10 : vector<8x128xf32>
    %12 = arith.subf %4, %11 : vector<8x128xf32>
    %13 = math.exp %12 : vector<8x128xf32>
    %14 = arith.subf %6, %11 : vector<8x128xf32>
    %15 = math.exp %14 : vector<8x128xf32>
    %16 = arith.addf %13, %15 : vector<8x128xf32>
    %17 = arith.subf %8, %11 : vector<8x128xf32>
    %18 = math.exp %17 : vector<8x128xf32>
    %19 = arith.addf %16, %18 : vector<8x128xf32>
    %20 = math.log %19 : vector<8x128xf32>
    %21 = arith.addf %11, %20 : vector<8x128xf32>
    %c0_i32_9 = arith.constant 0 : i32
    %22 = vector.broadcast %c0_i32_9 : i32 to vector<8x128xi32>
    %23 = arith.cmpi eq, %9, %22 : vector<8x128xi32>
    %c1_i32 = arith.constant 1 : i32
    %24 = vector.broadcast %c1_i32 : i32 to vector<8x128xi32>
    %25 = arith.cmpi eq, %9, %24 : vector<8x128xi32>
    %26 = arith.select %25, %6, %8 : vector<8x128xi1>, vector<8x128xf32>
    %27 = arith.select %23, %4, %26 : vector<8x128xi1>, vector<8x128xf32>
    %c0_10 = arith.constant 0 : index
    %c0_11 = arith.constant 0 : index
    %c0_12 = arith.constant 0 : index
    %28 = vector.load %arg4[%c0_10, %c0_11, %c0_12] : memref<1x8x128xf32, #tpu.memory_space<vmem>>, vector<1x8x128xf32>
    %29 = arith.subf %21, %27 : vector<8x128xf32>
    %30 = vector.shape_cast %29 : vector<8x128xf32> to vector<1x8x128xf32>
    %31 = arith.addf %28, %30 : vector<1x8x128xf32>
    %c0_13 = arith.constant 0 : index
    %c0_14 = arith.constant 0 : index
    %c0_15 = arith.constant 0 : index
    %32 = vector.load %arg4[%c0_13, %c0_14, %c0_15] : memref<1x8x128xf32, #tpu.memory_space<vmem>>, vector<1x8x128xf32>
    tpu.vector_store %arg4[%c0_13, %c0_14, %c0_15], %31 {strides = array<i32>} : memref<1x8x128xf32, #tpu.memory_space<vmem>>, vector<1x8x128xf32>,
    return
  }
  func.func @transform_0(%arg0: i32, %arg1: i32) -> (i32, i32, i32) {
    %c1_i32 = arith.constant 1 : i32
    %0 = arith.muli %arg0, %c1_i32 : i32
    %1 = arith.addi %0, %arg1 : i32
    %c0_i32 = arith.constant 0 : i32
    %c0_i32_0 = arith.constant 0 : i32
    %c0_i32_1 = arith.constant 0 : i32
    return %c0_i32, %1, %c0_i32_0 : i32, i32, i32
  }
  func.func @transform_1(%arg0: i32, %arg1: i32) -> (i32, i32) {
    %c1_i32 = arith.constant 1 : i32
    %0 = arith.muli %arg0, %c1_i32 : i32
    %1 = arith.addi %0, %arg1 : i32
    %c0_i32 = arith.constant 0 : i32
    %c0_i32_0 = arith.constant 0 : i32
    return %1, %c0_i32 : i32, i32
  }
  func.func @transform_2(%arg0: i32, %arg1: i32) -> (i32, i32, i32) {
    %c0_i32 = arith.constant 0 : i32
    %c0_i32_0 = arith.constant 0 : i32
    %c0_i32_1 = arith.constant 0 : i32
    return %arg0, %c0_i32, %c0_i32_0 : i32, i32, i32
  }
}

</mosaic_0001>

<llo_original>
// kernel: tpu_custom_call.1
$region0: #{tpu_custom_call.1}
  #allocation0 [shape = 'u32[]', space=smem, size = 0x4, offset = 0x4, fixed_abs, tag = 'smem constant byte address 0x4 - core index']
  #allocation1 [shape = 'u32[144,128]{1,0:T(1,128)}', space=vmem, size = 0x12000, scoped, tag = 'internal scratch']
  %s0 = inlined_call_operand.hbm [shape: f32[3,16,128], index: 0, kind: input, shape index: {}]
  %s1 = inlined_call_operand.hbm [shape: s32[16,128], index: 1, kind: input, shape index: {}]
  %s2 = inlined_call_operand.hbm [shape: f32[2,8,128], index: 2, kind: output, shape index: {}]
  %s3 = sld [smem:[#allocation0]]
  $region53: #{tpu_custom_call.1} parent=0
    _
  %s5 = ssub.s32 1, %s3
  %s6 = scalar_select 0, %s5, %s3
  $region1: #{tpu_custom_call.1} parent=0
    #allocation2 [shape = 'u8[24576]{0}', space=vmem, size = 0x6000, scoped, tag = 'input window, operand 0']
    #allocation3 [shape = 's32[2]{0}', space=sflag, size = 0x8, scoped, tag = 'scoped memory for tpu_custom_call.1']
    #allocation4 [shape = 's32[2]{0}', space=sflag, size = 0x8, scoped, tag = 'scoped memory for tpu_custom_call.1']
    #allocation5 [shape = 'u8[8192]{0}', space=vmem, size = 0x2000, scoped, tag = 'input window, operand 1']
    #allocation6 [shape = 's32[2]{0}', space=sflag, size = 0x8, scoped, tag = 'scoped memory for tpu_custom_call.1']
    #allocation7 [shape = 'u8[8192]{0}', space=vmem, size = 0x2000, scoped, tag = 'output window, operand 0']
    %7 = vsyncpa [#allocation3], 0
    %s8 = scalar_lea.sflag [#allocation3], 1
    %9 = vsyncpa %s8, 0
    %10 = vsyncpa [#allocation6], 0
    %s11 = scalar_lea.sflag [#allocation6], 1
    %12 = vsyncpa %s11, 0
    %13 = vsyncpa [#allocation4], 0
    %s14 = scalar_lea.sflag [#allocation4], 1
    %15 = vsyncpa %s14, 0
    loop: start=0, step=1, limit=4
    $region2: #{tpu_custom_call.1} parent=1 // loop_pre_header
      _
    $region3: #{tpu_custom_call.1} parent=1 // loop_header
      %s17 = sphi 0, %s21
      %p18 = scmp.ge.s32.totalorder %s17, 4
      %s24 = sphi 0, %s36
      %s25 = sphi 0, %s32
      %s26 = sphi 0, %s24
      %s27 = sphi 0, %s25
      %s28 = sphi 0, %s26
      %s29 = sphi 0, %s27
      %s41 = sphi 0, %s43
      %s44 = sphi 0, %s41
      %s45 = sphi 0, %s44
      %s61 = sphi 0, %s45
      %s69 = sphi 0, %s71
      %s72 = sphi 0, %s69
      %s73 = sphi 0, %s72
      %s89 = sphi 0, %s73
      %s95 = sphi 0, %s97
      %s98 = sphi 0, %s95
      %s99 = sphi 0, %s98
      %s115 = sphi 0, %s99
    $region4: #{tpu_custom_call.1} parent=1 // loop_header_branch
      %20 = sbr.rel (%p18) target = $region8
    $region5: #{tpu_custom_call.1} parent=1 // loop_body
      %s22 = ssub.s32 %s17, 1
      %s23 = ssub.s32 %s17, 2
      %s30 = sadd.s32 1, %s25
      %p31 = scmp.ge.s32.totalorder %s30, 1
      %s32 = scalar_select %p31, 0, %s30
      %s33 = sadd.s32 1, %s24
      %s34 = scalar_select %p31, %s33, %s24
      %p35 = scmp.ge.s32.totalorder %s34, 2
      %s36 = scalar_select %p35, 0, %s34
      %s37 = sadd.s32 %s24, %s25
      %s38 = sadd.s32 %s36, %s32
      %s39 = ssub.s32 %s37, %s38
      %p40 = scmp.eq.s32.totalorder %s39, 0
      %s42 = sadd.s32 %s41, 1
      %s43 = scalar_select %p40, %s41, %s42
      %p46 = pneg %p40
      %p47 = scmp.eq.s32.totalorder %s17, 1
      %p48 = por %p46, %p47
      %p49 = scmp.ne.s32.totalorder %s41, %s44
      %p50 = scmp.eq.s32.totalorder %s17, 0
      %p51 = por %p49, %p50
      %p52 = scmp.ne.s32.totalorder %s41, %s44
      %p53 = scmp.eq.s32.totalorder %s22, 1
      %p54 = por %p52, %p53
      %p55 = scmp.ne.s32.totalorder %s44, %s45
      %p56 = scmp.eq.s32.totalorder %s22, 0
      %p57 = por %p55, %p56
      %p58 = scmp.ne.s32.totalorder %s44, %s45
      %p59 = scmp.eq.s32.totalorder %s23, 1
      %p60 = por %p58, %p59
      %p62 = scmp.ne.s32.totalorder %s45, %s61
      %p63 = scmp.eq.s32.totalorder %s23, 0
      %p64 = por %p62, %p63
      %s65 = sadd.s32 %s24, %s25
      %s66 = sadd.s32 %s36, %s32
      %s67 = ssub.s32 %s65, %s66
      %p68 = scmp.eq.s32.totalorder %s67, 0
      %s70 = sadd.s32 %s69, 1
      %s71 = scalar_select %p68, %s69, %s70
      %p74 = pneg %p68
      %p75 = scmp.eq.s32.totalorder %s17, 1
      %p76 = por %p74, %p75
      %p77 = scmp.ne.s32.totalorder %s69, %s72
      %p78 = scmp.eq.s32.totalorder %s17, 0
      %p79 = por %p77, %p78
      %p80 = scmp.ne.s32.totalorder %s69, %s72
      %p81 = scmp.eq.s32.totalorder %s22, 1
      %p82 = por %p80, %p81
      %p83 = scmp.ne.s32.totalorder %s72, %s73
      %p84 = scmp.eq.s32.totalorder %s22, 0
      %p85 = por %p83, %p84
      %p86 = scmp.ne.s32.totalorder %s72, %s73
      %p87 = scmp.eq.s32.totalorder %s23, 1
      %p88 = por %p86, %p87
      %p90 = scmp.ne.s32.totalorder %s73, %s89
      %p91 = scmp.eq.s32.totalorder %s23, 0
      %p92 = por %p90, %p91
      %s93 = ssub.s32 %s24, %s36
      %p94 = scmp.eq.s32.totalorder %s93, 0
      %s96 = sadd.s32 %s95, 1
      %s97 = scalar_select %p94, %s95, %s96
      %p100 = pneg %p94
      %p101 = scmp.eq.s32.totalorder %s17, 1
      %p102 = por %p100, %p101
      %p103 = scmp.ne.s32.totalorder %s95, %s98
      %p104 = scmp.eq.s32.totalorder %s17, 0
      %p105 = por %p103, %p104
      %p106 = scmp.ne.s32.totalorder %s95, %s98
      %p107 = scmp.eq.s32.totalorder %s22, 1
      %p108 = por %p106, %p107
      %p109 = scmp.ne.s32.totalorder %s98, %s99
      %p110 = scmp.eq.s32.totalorder %s22, 0
      %p111 = por %p109, %p110
      %p112 = scmp.ne.s32.totalorder %s98, %s99
      %p113 = scmp.eq.s32.totalorder %s23, 1
      %p114 = por %p112, %p113
      %p116 = scmp.ne.s32.totalorder %s99, %s115
      %p117 = scmp.eq.s32.totalorder %s23, 0
      %p118 = por %p116, %p117
      %p119 = scmp.le.s32.totalorder 1, %s17
      %p120 = scmp.lt.s32.totalorder %s17, 3
      %p121 = pnand %p119, %p120
      %p122 = pneg %p121
      // Predicated region
      $region9: #{tpu_custom_call.1} parent=5 // pred_check
        _
      $region10: #{tpu_custom_call.1} parent=5 // pred_check_branch
        %124 = sbr.rel (%p121) target = $region12
      $region11: #{tpu_custom_call.1} parent=5 // pred_region
        %s125 = ssub.s32 %s17, 1
      $region12: #{tpu_custom_call.1} parent=5 // pred_fallthru
        _
      %p126 = scmp.lt.s32.totalorder %s17, 2
      // Predicated region
      $region13: #{tpu_custom_call.1} parent=5 // pred_check
        %p127 = pneg %p126
      $region14: #{tpu_custom_call.1} parent=5 // pred_check_branch
        %129 = sbr.rel (%p127) target = $region16
      $region15: #{tpu_custom_call.1} parent=5 // pred_region
        // Predicated region
        $region17: #{tpu_custom_call.1} parent=15 // pred_check
          %p130 = pneg %p51
        $region18: #{tpu_custom_call.1} parent=15 // pred_check_branch
          %132 = sbr.rel (%p130) target = $region20
        $region19: #{tpu_custom_call.1} parent=15 // pred_region
          %s133 = sand.u32 %s41, 1
          %s134 = scalar_lea.sflag [#allocation3], %s133
          %s135 = sand.u32 %s41, 1
          %s136 = smul.addr %s135, 24
          %s137 = scalar_lea.vmem [#allocation2], %s136
          %s138 = sadd.s32 %s24, %s25
          %s140 = ssub.s32 384, 384
          %141 = vsyncadd %s134, %s140
          %s142 = smul.addr %s138, 128
          %s143 = scalar_lea.hbm %s0, %s142
          %s144 = sshll.u32 %s137, 4
          %s145 = int_to_ptr.vmem [resolvable:$true] %s144
          %150 = dma.hbm_to_vmem [thread:$0]  %s143, 384, %s145, %s134, 256, 128, 8
        $region20: #{tpu_custom_call.1} parent=15 // pred_fallthru
          _
        // Predicated region
        $region21: #{tpu_custom_call.1} parent=15 // pred_check
          %p151 = pneg %p79
        $region22: #{tpu_custom_call.1} parent=15 // pred_check_branch
          %153 = sbr.rel (%p151) target = $region24
        $region23: #{tpu_custom_call.1} parent=15 // pred_region
          %s154 = sand.u32 %s69, 1
          %s155 = scalar_lea.sflag [#allocation6], %s154
          %s156 = sand.u32 %s69, 1
          %s157 = smul.addr %s156, 8
          %s158 = scalar_lea.vmem [#allocation5], %s157
          %s159 = sadd.s32 %s24, %s25
          %s161 = ssub.s32 128, 128
          %162 = vsyncadd %s155, %s161
          %s163 = smul.addr %s159, 128
          %s164 = scalar_lea.hbm %s1, %s163
          %s166 = sshll.u32 %s158, 4
          %s167 = int_to_ptr.vmem [resolvable:$true] %s166
          %169 = dma.hbm_to_vmem [thread:$0]  %s164, 128, %s167, %s155
        $region24: #{tpu_custom_call.1} parent=15 // pred_fallthru
          _
      $region16: #{tpu_custom_call.1} parent=5 // pred_fallthru
        _
      %p170 = scmp.le.s32.totalorder 1, %s17
      %p171 = scmp.lt.s32.totalorder %s17, 3
      %p172 = pnand %p170, %p171
      %p173 = pneg %p172
      // Predicated region
      $region25: #{tpu_custom_call.1} parent=5 // pred_check
        _
      $region26: #{tpu_custom_call.1} parent=5 // pred_check_branch
        %175 = sbr.rel (%p172) target = $region28
      $region27: #{tpu_custom_call.1} parent=5 // pred_region
        %s176 = ssub.s32 %s17, 1
        %s177 = sand.u32 %s44, 1
        %s178 = scalar_lea.sflag [#allocation3], %s177
        %s179 = sand.u32 %s44, 1
        %s180 = smul.addr %s179, 24
        %s181 = scalar_lea.vmem [#allocation2], %s180
        // Predicated region
        $region29: #{tpu_custom_call.1} parent=27 // pred_check
          %p182 = pneg %p57
        $region30: #{tpu_custom_call.1} parent=27 // pred_check_branch
          %184 = sbr.rel (%p182) target = $region32
        $region31: #{tpu_custom_call.1} parent=27 // pred_region
          %185 = dma.done %s178, 384
        $region32: #{tpu_custom_call.1} parent=27 // pred_fallthru
          _
        %s186 = sand.u32 %s72, 1
        %s187 = scalar_lea.sflag [#allocation6], %s186
        %s188 = sand.u32 %s72, 1
        %s189 = smul.addr %s188, 8
        %s190 = scalar_lea.vmem [#allocation5], %s189
        // Predicated region
        $region33: #{tpu_custom_call.1} parent=27 // pred_check
          %p191 = pneg %p85
        $region34: #{tpu_custom_call.1} parent=27 // pred_check_branch
          %193 = sbr.rel (%p191) target = $region36
        $region35: #{tpu_custom_call.1} parent=27 // pred_region
          %194 = dma.done %s187, 128
        $region36: #{tpu_custom_call.1} parent=27 // pred_fallthru
          _
        %s195 = sand.u32 %s44, 1
        %s196 = scalar_lea.sflag [#allocation3], %s195
        %s197 = sand.u32 %s44, 1
        %s198 = smul.addr %s197, 24
        %s199 = scalar_lea.vmem [#allocation2], %s198
        %p200 = pneg %p57
        %p201 = pneg %p54
        %s202 = sand.u32 %s72, 1
        %s203 = scalar_lea.sflag [#allocation6], %s202
        %s204 = sand.u32 %s72, 1
        %s205 = smul.addr %s204, 8
        %s206 = scalar_lea.vmem [#allocation5], %s205
        %p207 = pneg %p85
        %p208 = pneg %p82
        %p209 = pneg %p111
        %p210 = pneg %p108
        %s211 = sand.u32 %s98, 1
        %s212 = scalar_lea.sflag [#allocation4], %s211
        %s213 = sand.u32 %s98, 1
        %s214 = smul.addr %s213, 8
        %s215 = scalar_lea.vmem [#allocation7], %s214
        %s216 = sadd.s32 %s26, %s27
        %s217 = sadd.s32 %s26, %s27
        %p218 = scmp.eq.s32.totalorder %s27, 0
        // Predicated region
        $region37: #{tpu_custom_call.1} parent=27 // pred_check
          %p219 = pneg %p218
        $region38: #{tpu_custom_call.1} parent=27 // pred_check_branch
          %221 = sbr.rel (%p219) target = $region40
        $region39: #{tpu_custom_call.1} parent=27 // pred_region
          %222 = vst [vmem:[%s215] sm:$0xff] 0.0
        $region40: #{tpu_custom_call.1} parent=27 // pred_fallthru
          _
        %v223 = vld [vmem:[%s181] sm:$0xff]
        %s224 = scalar_lea.vmem %s181, 8 [#allocation2]
        %v225 = vld [vmem:[%s224] sm:$0xff]
        %s226 = scalar_lea.vmem %s181, 16 [#allocation2]
        %v227 = vld [vmem:[%s226] sm:$0xff]
        %v228 = vld [vmem:[%s190] sm:$0xff]
        %v229 = vmax.f32 %v225, %v227
        %v230 = vmax.f32 %v223, %v229
        %v231 = vsub.f32 %v223, %v230
        %v232 = vmul.f32 %v231, 1.442695
        %v233 = vpow.pop %v232
        %v234 = vsub.f32 %v225, %v230
        %v235 = vmul.f32 %v234, 1.442695
        %v236 = vpow.pop %v235
        %v237 = vadd.f32 %v233, %v236
        %v238 = vsub.f32 %v227, %v230
        %v239 = vmul.f32 %v238, 1.442695
        %v240 = vpow.pop %v239
        %v241 = vadd.f32 %v237, %v240
        %v242 = vlog2.pop %v241
        %v243 = vmul.f32 %v242, 0.6931472
        %v244 = vadd.f32 %v230, %v243
        %vm245 = vcmp.eq.s32.totalorder %v228, 0
        %vm246 = vcmp.eq.s32.totalorder %v228, 1
        %v247 = vsel %vm246, %v225, %v227
        %v248 = vsel %vm245, %v223, %v247
        %v249 = vld [vmem:[%s215] sm:$0xff]
        %v250 = vsub.f32 %v244, %v248
        %v251 = vadd.f32 %v249, %v250
        %252 = vst [vmem:[%s215] sm:$0xff] %v251
        %s253 = sand.u32 %s98, 1
        %s254 = scalar_lea.sflag [#allocation4], %s253
        %s255 = sand.u32 %s98, 1
        %s256 = smul.addr %s255, 8
        %s257 = scalar_lea.vmem [#allocation7], %s256
        // Predicated region
        $region41: #{tpu_custom_call.1} parent=27 // pred_check
          %p258 = pneg %p108
        $region42: #{tpu_custom_call.1} parent=27 // pred_check_branch
          %260 = sbr.rel (%p258) target = $region44
        $region43: #{tpu_custom_call.1} parent=27 // pred_region
          %s262 = ssub.s32 128, 128
          %263 = vsyncadd %s254, %s262
          %s264 = smul.addr %s26, 128
          %s265 = scalar_lea.hbm %s2, %s264
          %s267 = sshll.u32 %s257, 4
          %s268 = int_to_ptr.vmem [resolvable:$true] %s267
          %270 = dma.vmem_to_hbm [thread:$0]  %s268, 128, %s265, %s254
        $region44: #{tpu_custom_call.1} parent=27 // pred_fallthru
          _
      $region28: #{tpu_custom_call.1} parent=5 // pred_fallthru
        _
      %p271 = scmp.le.s32.totalorder 2, %s17
      // Predicated region
      $region45: #{tpu_custom_call.1} parent=5 // pred_check
        %p272 = pneg %p271
      $region46: #{tpu_custom_call.1} parent=5 // pred_check_branch
        %274 = sbr.rel (%p272) target = $region48
      $region47: #{tpu_custom_call.1} parent=5 // pred_region
        %s275 = ssub.s32 %s17, 2
        // Predicated region
        $region49: #{tpu_custom_call.1} parent=47 // pred_check
          %p276 = pneg %p114
        $region50: #{tpu_custom_call.1} parent=47 // pred_check_branch
          %278 = sbr.rel (%p276) target = $region52
        $region51: #{tpu_custom_call.1} parent=47 // pred_region
          %s279 = sand.u32 %s99, 1
          %s280 = scalar_lea.sflag [#allocation4], %s279
          %s281 = sand.u32 %s99, 1
          %s282 = smul.addr %s281, 8
          %s283 = scalar_lea.vmem [#allocation7], %s282
          %284 = dma.done %s280, 128
        $region52: #{tpu_custom_call.1} parent=47 // pred_fallthru
          _
      $region48: #{tpu_custom_call.1} parent=5 // pred_fallthru
        _
    $region6: #{tpu_custom_call.1} parent=1 // loop_footer
      %s21 = sadd.s32 1, %s17
    $region7: #{tpu_custom_call.1} parent=1 // loop_footer_branch
      %16 = sbr.rel target = $region3
    $region8: #{tpu_custom_call.1} parent=1 // loop_exit
      _
    %285 = vsyncpa [#allocation3], 1
    %s286 = scalar_lea.sflag [#allocation3], 1
    %287 = vsyncpa %s286, 1
    %288 = vsyncpa [#allocation6], 1
    %s289 = scalar_lea.sflag [#allocation6], 1
    %290 = vsyncpa %s289, 1
    %291 = vsyncpa [#allocation4], 1
    %s292 = scalar_lea.sflag [#allocation4], 1
    %293 = vsyncpa %s292, 1

</llo_original>
